<compile_context>
chip_gen: v6e
topology: v6e:2x2x1
jax: 0.10.0
libtpu: 0.0.40
codegen_flags: <defaults>
</compile_context>

<pallas_src>
import jax
import jax.numpy as jnp
from jax.experimental import pallas as pl
from jax.experimental.pallas import tpu as pltpu


def ffn_kernel(x_ref, w1_ref, b1_ref, w2_ref, b2_ref, o_ref, acc_ref):
    k = pl.program_id(1)

    @pl.when(k == 0)
    def _init():
        # Fold the second bias into the accumulator init: saves one full
        # (tile_m, d_model) VPU add per row tile.
        acc_ref[...] = jnp.broadcast_to(
            b2_ref[...].astype(jnp.float32), acc_ref.shape)

    # First linear (MXU) on this d_ff chunk, bias + ReLU in f32 vregs.
    h = jnp.dot(x_ref[...], w1_ref[...], preferred_element_type=jnp.float32)
    h = jnp.maximum(h + b1_ref[...].astype(jnp.float32), 0.0)
    # dropout == identity (eval mode)

    # Second linear (MXU), accumulated into the resident f32 VMEM accumulator.
    acc_ref[...] += jnp.dot(h.astype(w2_ref.dtype), w2_ref[...],
                            preferred_element_type=jnp.float32)

    @pl.when(k == pl.num_programs(1) - 1)
    def _finalize():
        o_ref[...] = acc_ref[...].astype(o_ref.dtype)


def _pick_row_tile(rows, max_tile):
    """Row tile: multiple of 8 sublanes, capped at max_tile."""
    return max(min(max_tile, -(-rows // 8) * 8), 8)


def _pick_dff_tile(d_ff, max_tile):
    """d_ff chunk: a multiple of 128 lanes that divides d_ff, else full d_ff."""
    if d_ff <= max_tile:
        return d_ff
    t = (max_tile // 128) * 128
    while t >= 128:
        if d_ff % t == 0:
            return t
        t -= 128
    return d_ff


def feed_forward(x, w1, b1, w2, b2, *, tile_m_max=256, tile_k_max=512,
                 vmem_limit_bytes=None):
    """x: (B, S, d_model).  w1: (d_model, d_ff), b1: (d_ff,),
    w2: (d_ff, d_model), b2: (d_model,).  Returns (B, S, d_model).

    Weights/activations may be bf16 (matmuls then run in bf16 on the MXU);
    biases are promoted to f32 and the accumulation is always f32."""
    B, S, d_model = x.shape
    d_ff = w1.shape[1]
    rows = B * S

    tile_m = _pick_row_tile(rows, tile_m_max)
    tile_k = _pick_dff_tile(d_ff, tile_k_max)
    grid_m = -(-rows // tile_m)
    grid_k = d_ff // tile_k
    rows_padded = grid_m * tile_m

    x2 = x.reshape(rows, d_model)
    if rows_padded != rows:
        # Padded rows compute garbage (biases make them nonzero) but are
        # sliced off below.
        x2 = jnp.pad(x2, ((0, rows_padded - rows), (0, 0)))

    b1_2 = b1.reshape(1, d_ff).astype(jnp.float32)
    b2_2 = b2.reshape(1, d_model).astype(jnp.float32)

    itemsize = x.dtype.itemsize
    cost = pl.CostEstimate(
        flops=4 * rows * d_model * d_ff,
        transcendentals=0,
        bytes_accessed=(2 * rows * d_model * itemsize          # x in + out
                        + w1.size * w1.dtype.itemsize
                        + w2.size * w2.dtype.itemsize
                        + (b1.size + b2.size) * 4),
    )

    out = pl.pallas_call(
        ffn_kernel,
        out_shape=jax.ShapeDtypeStruct((rows_padded, d_model), x.dtype),
        grid_spec=pltpu.PrefetchScalarGridSpec(
            num_scalar_prefetch=0,
            grid=(grid_m, grid_k),                 # rows parallel, d_ff innermost
            in_specs=[
                pl.BlockSpec((tile_m, d_model), lambda i, k: (i, 0)),   # x rows
                pl.BlockSpec((d_model, tile_k), lambda i, k: (0, k)),   # w1 chunk
                pl.BlockSpec((1, tile_k), lambda i, k: (0, k)),         # b1 chunk
                pl.BlockSpec((tile_k, d_model), lambda i, k: (k, 0)),   # w2 chunk
                pl.BlockSpec((1, d_model), lambda i, k: (0, 0)),        # b2
            ],
            out_specs=pl.BlockSpec((tile_m, d_model), lambda i, k: (i, 0)),
            scratch_shapes=[pltpu.VMEM((tile_m, d_model), jnp.float32)],
        ),
        compiler_params=pltpu.CompilerParams(
            dimension_semantics=("parallel", "arbitrary"),
            vmem_limit_bytes=vmem_limit_bytes),
        cost_estimate=cost,
    )(x2, w1, b1_2, w2, b2_2)

    if rows_padded != rows:
        out = out[:rows]
    return out.reshape(B, S, d_model)


if __name__ == "__main__":
    # Small shapes consistent with the module's forward: (batch, seq, d_model).
    # Odd seq length exercises the row-padding path; d_ff=256 allows a split
    # d_ff grid in the second test.
    B, S, d_model, d_ff = 2, 13, 32, 256

    key = jax.random.PRNGKey(0)
    kx, kw1, kb1, kw2, kb2 = jax.random.split(key, 5)

    x = jax.random.normal(kx, (B, S, d_model), dtype=jnp.float32)

    # Deterministic parameter init (PyTorch Linear-style uniform bounds),
    # stored pre-transposed as (in, out).
    bound1 = 1.0 / (d_model ** 0.5)
    w1 = jax.random.uniform(kw1, (d_model, d_ff), minval=-bound1, maxval=bound1,
                            dtype=jnp.float32)
    b1 = jax.random.uniform(kb1, (d_ff,), minval=-bound1, maxval=bound1,
                            dtype=jnp.float32)
    bound2 = 1.0 / (d_ff ** 0.5)
    w2 = jax.random.uniform(kw2, (d_ff, d_model), minval=-bound2, maxval=bound2,
                            dtype=jnp.float32)
    b2 = jax.random.uniform(kb2, (d_model,), minval=-bound2, maxval=bound2,
                            dtype=jnp.float32)

    # Pure-JAX reference (dropout is identity in eval mode).
    ref = jnp.maximum(x @ w1 + b1, 0.0) @ w2 + b2

    # 1) Default (large) tiles: single grid step at these demo shapes,
    #    256-row / 512-wide chunks on real shapes.
    out = jax.block_until_ready(feed_forward(x, w1, b1, w2, b2))
    assert out.shape == (B, S, d_model)
    assert jnp.allclose(out, ref, atol=2e-5, rtol=2e-5)

    # 2) Forced small tiles: exercises the full 2D grid
    #    (row padding + d_ff chunk accumulation + pl.when init/finalize).
    out2 = jax.block_until_ready(
        feed_forward(x, w1, b1, w2, b2, tile_m_max=8, tile_k_max=128))
    assert jnp.allclose(out2, ref, atol=2e-5, rtol=2e-5)

    print("KERNEL_OK")
</pallas_src>

<mosaic_0001>
module attributes {stable_mosaic.version = 11 : i64} {
  func.func @ffn_kernel(%arg0: i32, %arg1: i32, %arg2: memref<32x32xf32, #tpu.memory_space<vmem>>, %arg3: memref<32x256xf32, #tpu.memory_space<vmem>>, %arg4: memref<1x256xf32, #tpu.memory_space<vmem>>, %arg5: memref<256x32xf32, #tpu.memory_space<vmem>>, %arg6: memref<1x32xf32, #tpu.memory_space<vmem>>, %arg7: memref<32x32xf32, #tpu.memory_space<vmem>>, %arg8: memref<32x32xf32, #tpu.memory_space<vmem>>) attributes {dimension_semantics = [#tpu.dimension_semantics<parallel>, #tpu.dimension_semantics<arbitrary>], iteration_bounds = array<i64: 1, 1>, scalar_prefetch = 0 : i64, scratch_operands = 1 : i64, tpu.core_type = #tpu.core_type<tc>, window_params = [{transform_indices = @transform_0, window_bounds = array<i64: 32, 32>}, {transform_indices = @transform_1, window_bounds = array<i64: 32, 256>}, {transform_indices = @transform_2, window_bounds = array<i64: 1, 256>}, {transform_indices = @transform_3, window_bounds = array<i64: 256, 32>}, {pipeline_mode = #tpu.pipeline_mode<synchronous>, transform_indices = @transform_4, window_bounds = array<i64: 1, 32>}, {transform_indices = @transform_5, window_bounds = array<i64: 32, 32>}]} {
    %c0_i32 = arith.constant 0 : i32
    %0 = arith.cmpi eq, %arg1, %c0_i32 : i32
    %1 = arith.extui %0 : i1 to i32
    %c0_i32_0 = arith.constant 0 : i32
    %2 = arith.cmpi ne, %1, %c0_i32_0 : i32
    scf.if %2 {
      %c0_16 = arith.constant 0 : index
      %c0_17 = arith.constant 0 : index
      %19 = vector.load %arg6[%c0_16, %c0_17] : memref<1x32xf32, #tpu.memory_space<vmem>>, vector<1x32xf32>
      %20 = vector.shape_cast %19 : vector<1x32xf32> to vector<1x32xf32>
      %21 = vector.broadcast %20 : vector<1x32xf32> to vector<32x32xf32>
      %c0_18 = arith.constant 0 : index
      %c0_19 = arith.constant 0 : index
      %22 = vector.load %arg8[%c0_18, %c0_19] : memref<32x32xf32, #tpu.memory_space<vmem>>, vector<32x32xf32>
      tpu.vector_store %arg8[%c0_18, %c0_19], %21 {strides = array<i32>} : memref<32x32xf32, #tpu.memory_space<vmem>>, vector<32x32xf32>,
    } else {
    }
    %c0 = arith.constant 0 : index
    %c0_1 = arith.constant 0 : index
    %3 = vector.load %arg2[%c0, %c0_1] : memref<32x32xf32, #tpu.memory_space<vmem>>, vector<32x32xf32>
    %c0_2 = arith.constant 0 : index
    %c0_3 = arith.constant 0 : index
    %4 = vector.load %arg3[%c0_2, %c0_3] : memref<32x256xf32, #tpu.memory_space<vmem>>, vector<32x256xf32>
    %cst = arith.constant dense<0.000000e+00> : vector<32x256xf32>
    %5 = tpu.matmul %3, %4, %cst {dimension_numbers = #tpu.dot_dimension_numbers<[1], [0], [0], [1], [0, 0, 1, 1], [], []>} : vector<32x32xf32>, vector<32x256xf32>, vector<32x256xf32> -> vector<32x256xf32>
    %c0_4 = arith.constant 0 : index
    %c0_5 = arith.constant 0 : index
    %6 = vector.load %arg4[%c0_4, %c0_5] : memref<1x256xf32, #tpu.memory_space<vmem>>, vector<1x256xf32>
    %7 = vector.broadcast %6 : vector<1x256xf32> to vector<32x256xf32>
    %8 = arith.addf %5, %7 : vector<32x256xf32>
    %cst_6 = arith.constant 0.000000e+00 : f32
    %9 = vector.broadcast %cst_6 : f32 to vector<32x256xf32>
    %10 = arith.maximumf %8, %9 : vector<32x256xf32>
    %c0_7 = arith.constant 0 : index
    %c0_8 = arith.constant 0 : index
    %11 = vector.load %arg8[%c0_7, %c0_8] : memref<32x32xf32, #tpu.memory_space<vmem>>, vector<32x32xf32>
    %c0_9 = arith.constant 0 : index
    %c0_10 = arith.constant 0 : index
    %12 = vector.load %arg5[%c0_9, %c0_10] : memref<256x32xf32, #tpu.memory_space<vmem>>, vector<256x32xf32>
    %cst_11 = arith.constant dense<0.000000e+00> : vector<32x32xf32>
    %13 = tpu.matmul %10, %12, %cst_11 {dimension_numbers = #tpu.dot_dimension_numbers<[1], [0], [0], [1], [0, 0, 1, 1], [], []>} : vector<32x256xf32>, vector<256x32xf32>, vector<32x32xf32> -> vector<32x32xf32>
    %14 = arith.addf %11, %13 : vector<32x32xf32>
    %c0_12 = arith.constant 0 : index
    %c0_13 = arith.constant 0 : index
    %15 = vector.load %arg8[%c0_12, %c0_13] : memref<32x32xf32, #tpu.memory_space<vmem>>, vector<32x32xf32>
    tpu.vector_store %arg8[%c0_12, %c0_13], %14 {strides = array<i32>} : memref<32x32xf32, #tpu.memory_space<vmem>>, vector<32x32xf32>,
    %c0_i32_14 = arith.constant 0 : i32
    %16 = arith.cmpi eq, %arg1, %c0_i32_14 : i32
    %17 = arith.extui %16 : i1 to i32
    %c0_i32_15 = arith.constant 0 : i32
    %18 = arith.cmpi ne, %17, %c0_i32_15 : i32
    scf.if %18 {
      %c0_16 = arith.constant 0 : index
      %c0_17 = arith.constant 0 : index
      %19 = vector.load %arg8[%c0_16, %c0_17] : memref<32x32xf32, #tpu.memory_space<vmem>>, vector<32x32xf32>
      %c0_18 = arith.constant 0 : index
      %c0_19 = arith.constant 0 : index
      %20 = vector.load %arg7[%c0_18, %c0_19] : memref<32x32xf32, #tpu.memory_space<vmem>>, vector<32x32xf32>
      tpu.vector_store %arg7[%c0_18, %c0_19], %19 {strides = array<i32>} : memref<32x32xf32, #tpu.memory_space<vmem>>, vector<32x32xf32>,
    } else {
    }
    return
  }
  func.func @transform_0(%arg0: i32, %arg1: i32) -> (i32, i32) {
    %c0_i32 = arith.constant 0 : i32
    %c0_i32_0 = arith.constant 0 : i32
    return %arg0, %c0_i32 : i32, i32
  }
  func.func @transform_1(%arg0: i32, %arg1: i32) -> (i32, i32) {
    %c0_i32 = arith.constant 0 : i32
    %c0_i32_0 = arith.constant 0 : i32
    return %c0_i32, %arg1 : i32, i32
  }
  func.func @transform_2(%arg0: i32, %arg1: i32) -> (i32, i32) {
    %c0_i32 = arith.constant 0 : i32
    %c0_i32_0 = arith.constant 0 : i32
    return %c0_i32, %arg1 : i32, i32
  }
  func.func @transform_3(%arg0: i32, %arg1: i32) -> (i32, i32) {
    %c0_i32 = arith.constant 0 : i32
    %c0_i32_0 = arith.constant 0 : i32
    return %arg1, %c0_i32 : i32, i32
  }
  func.func @transform_4(%arg0: i32, %arg1: i32) -> (i32, i32) {
    %c0_i32 = arith.constant 0 : i32
    %c0_i32_0 = arith.constant 0 : i32
    %c0_i32_1 = arith.constant 0 : i32
    return %c0_i32, %c0_i32_0 : i32, i32
  }
  func.func @transform_5(%arg0: i32, %arg1: i32) -> (i32, i32) {
    %c0_i32 = arith.constant 0 : i32
    %c0_i32_0 = arith.constant 0 : i32
    return %arg0, %c0_i32 : i32, i32
  }
}

</mosaic_0001>

<llo_original>
// kernel: tpu_custom_call.1
$region0: #{tpu_custom_call.1}
  #allocation0 [shape = 'u32[]', space=smem, size = 0x4, offset = 0x4, fixed_abs, tag = 'smem constant byte address 0x4 - core index']
  #allocation1 [shape = 'u32[144,128]{1,0:T(1,128)}', space=vmem, size = 0x12000, scoped, tag = 'internal scratch']
  #allocation2 [shape = 'f32[32,32]{1,0:T(8,128)}', space=vmem, size = 0x4000, scoped, tag = 'scratch operand']
  %s0 = inlined_call_operand.vmem [shape: f32[32,32], index: 0, kind: input, shape index: {}]
  %s1 = inlined_call_operand.vmem [shape: f32[32,256], index: 1, kind: input, shape index: {}]
  %s2 = inlined_call_operand.vmem [shape: f32[1,256], index: 2, kind: input, shape index: {}]
  %s3 = inlined_call_operand.vmem [shape: f32[256,32], index: 3, kind: input, shape index: {}]
  %s4 = inlined_call_operand.vmem [shape: f32[1,32], index: 4, kind: input, shape index: {}]
  %s5 = inlined_call_operand.hbm [shape: f32[32,32], index: 5, kind: output, shape index: {}]
  %s6 = sld [smem:[#allocation0]]
  $region38: #{tpu_custom_call.1} parent=0
    _
  %s8 = ssub.s32 1, %s6
  %s9 = scalar_select 0, %s8, %s6
  $region1: #{tpu_custom_call.1} parent=0
    #allocation3 [shape = 'u8[16384]{0}', space=vmem, size = 0x4000, scoped, tag = 'output window, operand 0, single buffered']
    #allocation4 [shape = 's32[1]{0}', space=sflag, size = 0x4, scoped, tag = 'scoped memory for tpu_custom_call.1']
    %10 = vsyncpa [#allocation4], 0
    // Predicated region
    $region2: #{tpu_custom_call.1} parent=1 // pred_check
      _
    $region3: #{tpu_custom_call.1} parent=1 // pred_check_branch
      %12 = sbr.rel (0) target = $region5
    $region4: #{tpu_custom_call.1} parent=1 // pred_region
      _
    $region5: #{tpu_custom_call.1} parent=1 // pred_fallthru
      _
    // Predicated region
    $region6: #{tpu_custom_call.1} parent=1 // pred_check
      _
    $region7: #{tpu_custom_call.1} parent=1 // pred_check_branch
      %14 = sbr.rel (0) target = $region9
    $region8: #{tpu_custom_call.1} parent=1 // pred_region
      _
    $region9: #{tpu_custom_call.1} parent=1 // pred_fallthru
      _
    // Predicated region
    $region10: #{tpu_custom_call.1} parent=1 // pred_check
      _
    $region11: #{tpu_custom_call.1} parent=1 // pred_check_branch
      %16 = sbr.rel (0) target = $region13
    $region12: #{tpu_custom_call.1} parent=1 // pred_region
      _
    $region13: #{tpu_custom_call.1} parent=1 // pred_fallthru
      _
    // Predicated region
    $region14: #{tpu_custom_call.1} parent=1 // pred_check
      _
    $region15: #{tpu_custom_call.1} parent=1 // pred_check_branch
      %18 = sbr.rel (0) target = $region17
    $region16: #{tpu_custom_call.1} parent=1 // pred_region
      _
    $region17: #{tpu_custom_call.1} parent=1 // pred_fallthru
      _
    // Predicated region
    $region18: #{tpu_custom_call.1} parent=1 // pred_check
      _
    $region19: #{tpu_custom_call.1} parent=1 // pred_check_branch
      %20 = sbr.rel (0) target = $region21
    $region20: #{tpu_custom_call.1} parent=1 // pred_region
      _
    $region21: #{tpu_custom_call.1} parent=1 // pred_fallthru
      _
    %p21 = scmp.eq.s32.totalorder 0, 0
    // Predicated region
    $region22: #{tpu_custom_call.1} parent=1 // pred_check
      %p22 = pneg %p21
    $region23: #{tpu_custom_call.1} parent=1 // pred_check_branch
      %24 = sbr.rel (%p22) target = $region25
    $region24: #{tpu_custom_call.1} parent=1 // pred_region
      %v25 = vld [vmem:[%s4] sm:$0x1]
      %v27 = vlaneseq
      %v28 = vshrl.u32 %v27, 7
      %v29 = vsub.s32 0, %v28
      %v30 = vrot.slane %v25, %v29
      %vm32 = vcmask 261120
      %33 = vst.msk [vmem:[#allocation2] sm:$0xff] %vm32, %v30
      %34 = vst.msk [vmem:[#allocation2 + $0x8] sm:$0xff] %vm32, %v30
      %35 = vst.msk [vmem:[#allocation2 + $0x10] sm:$0xff] %vm32, %v30
      %36 = vst.msk [vmem:[#allocation2 + $0x18] sm:$0xff] %vm32, %v30
    $region25: #{tpu_custom_call.1} parent=1 // pred_fallthru
      _
    %v37 = vld [vmem:[%s0] sm:$0xff]
    %v38 = vld [vmem:[%s0 + $0x8] sm:$0xff]
    %v39 = vld [vmem:[%s0 + $0x10] sm:$0xff]
    %v40 = vld [vmem:[%s0 + $0x18] sm:$0xff]
    %v41 = vld [vmem:[%s1] sm:$0xff]
    %v42 = vld [vmem:[%s1 + $0x8] sm:$0xff]
    %v43 = vld [vmem:[%s1 + $0x10] sm:$0xff]
    %v44 = vld [vmem:[%s1 + $0x18] sm:$0xff]
    %v45 = vld [vmem:[%s1 + $0x20] sm:$0xff]
    %v46 = vld [vmem:[%s1 + $0x28] sm:$0xff]
    %v47 = vld [vmem:[%s1 + $0x30] sm:$0xff]
    %v48 = vld [vmem:[%s1 + $0x38] sm:$0xff]
    %v49 = vld [vmem:[%s2] sm:$0x3]
    %v51 = vlaneseq
    %v52 = vshrl.u32 %v51, 7
    %v53 = vsub.s32 0, %v52
    %v54 = vrot.slane %v49, %v53
    %v55 = vlaneseq
    %v56 = vshrl.u32 %v55, 7
    %v57 = vsub.s32 1, %v56
    %v58 = vrot.slane %v49, %v57
    %vm61 = vcmask 261120
    %v63 = vsel %vm61, %v37, 0
    %v66 = vsel %vm61, %v38, 0
    %v69 = vsel %vm61, %v39, 0
    %v72 = vsel %vm61, %v40, 0
    %74 = vmatprep.subr.mxu0 0.0
    %75 = vmatpush1.msra.mxu0 0.0
    %76 = vmatprep.subr.mxu0 0.0
    %77 = vmatpush1.msra.mxu0 0.0
    %78 = vmatprep.subr.mxu0 0.0
    %79 = vmatpush1.msra.mxu0 0.0
    %80 = vmatprep.subr.mxu0 0.0
    %81 = vmatpush1.msra.mxu0 0.0
    %82 = vmatprep.subr.mxu0 0.0
    %83 = vmatpush1.msra.mxu0 0.0
    %84 = vmatprep.subr.mxu0 0.0
    %85 = vmatpush1.msra.mxu0 0.0
    %86 = vmatprep.subr.mxu0 0.0
    %87 = vmatpush1.msra.mxu0 0.0
    %88 = vmatprep.subr.mxu0 0.0
    %89 = vmatpush1.msra.mxu0 0.0
    %90 = vmatprep.subr.mxu0 0.0
    %91 = vmatpush1.msra.mxu0 0.0
    %92 = vmatprep.subr.mxu0 0.0
    %93 = vmatpush1.msra.mxu0 0.0
    %94 = vmatprep.subr.mxu0 0.0
    %95 = vmatpush1.msra.mxu0 0.0
    %96 = vmatprep.subr.mxu0 0.0
    %97 = vmatpush1.msra.mxu0 0.0
    %98 = vmatprep.subr.mxu0 %v48
    %99 = vmatpush1.msra.mxu0 %v47
    %100 = vmatprep.subr.mxu0 %v46
    %101 = vmatpush1.msra.mxu0 %v45
    %102 = vmatprep.subr.mxu0 %v44
    %103 = vmatpush1.msra.mxu0 %v43
    %104 = vmatprep.subr.mxu0 %v42
    %105 = vmatpush1.msra.mxu0 %v41
    %106 = vmatprep.subr.mxu0 0.0
    %107 = vmatpush2.msra.mxu0 0.0
    %108 = vmatprep.subr.mxu0 0.0
    %109 = vmatpush2.msra.mxu0 0.0
    %110 = vmatprep.subr.mxu0 0.0
    %111 = vmatpush2.msra.mxu0 0.0
    %112 = vmatprep.subr.mxu0 0.0
    %113 = vmatpush2.msra.mxu0 0.0
    %114 = vmatprep.subr.mxu0 0.0
    %115 = vmatpush2.msra.mxu0 0.0
    %116 = vmatprep.subr.mxu0 0.0
    %117 = vmatpush2.msra.mxu0 0.0
    %118 = vmatprep.subr.mxu0 0.0
    %119 = vmatpush2.msra.mxu0 0.0
    %120 = vmatprep.subr.mxu0 0.0
    %121 = vmatpush2.msra.mxu0 0.0
    %122 = vmatprep.subr.mxu0 0.0
    %123 = vmatpush2.msra.mxu0 0.0
    %124 = vmatprep.subr.mxu0 0.0
    %125 = vmatpush2.msra.mxu0 0.0
    %126 = vmatprep.subr.mxu0 0.0
    %127 = vmatpush2.msra.mxu0 0.0
    %128 = vmatprep.subr.mxu0 0.0
    %129 = vmatpush2.msra.mxu0 0.0
    %130 = vmatprep.subr.mxu0 0.0
    %131 = vmatpush2.msra.mxu0 0.0
    %132 = vmatprep.subr.mxu0 0.0
    %133 = vmatpush2.msra.mxu0 0.0
    %134 = vmatprep.subr.mxu0 0.0
    %135 = vmatpush2.msra.mxu0 0.0
    %136 = vmatprep.subr.mxu0 0.0
    %137 = vmatpush2.msra.mxu0 0.0
    %138 = vmatprep.mubr.f32.mxu0 0.0
    %139 = vmatmul.mubr.f32.gmra.mxu0 %v63
    %v140 = vpop.f32.mrf.mxu0
    %v141 = vadd.f32 %v54, %v140
    %v142 = vpop.f32.mrf.mxu0
    %v143 = vadd.f32 %v58, %v142
    %144 = vmatprep.mubr.f32.mxu0 0.0
    %145 = vmatmul.mubr.f32.gmra.mxu0 %v66
    %v146 = vpop.f32.mrf.mxu0
    %v147 = vadd.f32 %v54, %v146
    %v148 = vpop.f32.mrf.mxu0
    %v149 = vadd.f32 %v58, %v148
    %150 = vmatprep.mubr.f32.mxu0 0.0
    %151 = vmatmul.mubr.f32.gmra.mxu0 %v69
    %v152 = vpop.f32.mrf.mxu0
    %v153 = vadd.f32 %v54, %v152
    %v154 = vpop.f32.mrf.mxu0
    %v155 = vadd.f32 %v58, %v154
    %156 = vmatprep.mubr.f32.mxu0 0.0
    %157 = vmatmul.mubr.f32.gmra.mxu0 %v72
    %v158 = vpop.f32.mrf.mxu0
    %v159 = vadd.f32 %v54, %v158
    %v160 = vpop.f32.mrf.mxu0
    %v161 = vadd.f32 %v58, %v160
    %162 = vdwg.mxu0
    %v163 = vmax.f32 %v141, 0.0
    %v164 = vmax.f32 %v143, 0.0
    %v165 = vmax.f32 %v147, 0.0
    %v166 = vmax.f32 %v149, 0.0
    %v167 = vmax.f32 %v153, 0.0
    %v168 = vmax.f32 %v155, 0.0
    %v169 = vmax.f32 %v159, 0.0
    %v170 = vmax.f32 %v161, 0.0
    %v171 = vld [vmem:[#allocation2] sm:$0xff]
    %v172 = vld [vmem:[#allocation2 + $0x8] sm:$0xff]
    %v173 = vld [vmem:[#allocation2 + $0x10] sm:$0xff]
    %v174 = vld [vmem:[#allocation2 + $0x18] sm:$0xff]
    %v175 = vld [vmem:[%s3] sm:$0xff]
    %v176 = vld [vmem:[%s3 + $0x8] sm:$0xff]
    %v177 = vld [vmem:[%s3 + $0x10] sm:$0xff]
    %v178 = vld [vmem:[%s3 + $0x18] sm:$0xff]
    %v179 = vld [vmem:[%s3 + $0x20] sm:$0xff]
    %v180 = vld [vmem:[%s3 + $0x28] sm:$0xff]
    %v181 = vld [vmem:[%s3 + $0x30] sm:$0xff]
    %v182 = vld [vmem:[%s3 + $0x38] sm:$0xff]
    %v183 = vld [vmem:[%s3 + $0x40] sm:$0xff]
    %v184 = vld [vmem:[%s3 + $0x48] sm:$0xff]
    %v185 = vld [vmem:[%s3 + $0x50] sm:$0xff]
    %v186 = vld [vmem:[%s3 + $0x58] sm:$0xff]
    %v187 = vld [vmem:[%s3 + $0x60] sm:$0xff]
    %v188 = vld [vmem:[%s3 + $0x68] sm:$0xff]
    %v189 = vld [vmem:[%s3 + $0x70] sm:$0xff]
    %v190 = vld [vmem:[%s3 + $0x78] sm:$0xff]
    %v191 = vld [vmem:[%s3 + $0x80] sm:$0xff]
    %v192 = vld [vmem:[%s3 + $0x88] sm:$0xff]
    %v193 = vld [vmem:[%s3 + $0x90] sm:$0xff]
    %v194 = vld [vmem:[%s3 + $0x98] sm:$0xff]
    %v195 = vld [vmem:[%s3 + $0xa0] sm:$0xff]
    %v196 = vld [vmem:[%s3 + $0xa8] sm:$0xff]
    %v197 = vld [vmem:[%s3 + $0xb0] sm:$0xff]
    %v198 = vld [vmem:[%s3 + $0xb8] sm:$0xff]
    %v199 = vld [vmem:[%s3 + $0xc0] sm:$0xff]
    %v200 = vld [vmem:[%s3 + $0xc8] sm:$0xff]
    %v201 = vld [vmem:[%s3 + $0xd0] sm:$0xff]
    %v202 = vld [vmem:[%s3 + $0xd8] sm:$0xff]
    %v203 = vld [vmem:[%s3 + $0xe0] sm:$0xff]
    %v204 = vld [vmem:[%s3 + $0xe8] sm:$0xff]
    %v205 = vld [vmem:[%s3 + $0xf0] sm:$0xff]
    %v206 = vld [vmem:[%s3 + $0xf8] sm:$0xff]
    %207 = vmatprep.subr.mxu0 0.0
    %208 = vmatpush1.msra.mxu0 %v190
    %209 = vmatprep.subr.mxu0 0.0
    %210 = vmatpush1.msra.mxu0 %v189
    %211 = vmatprep.subr.mxu0 0.0
    %212 = vmatpush1.msra.mxu0 %v188
    %213 = vmatprep.subr.mxu0 0.0
    %214 = vmatpush1.msra.mxu0 %v187
    %215 = vmatprep.subr.mxu0 0.0
    %216 = vmatpush1.msra.mxu0 %v186
    %217 = vmatprep.subr.mxu0 0.0
    %218 = vmatpush1.msra.mxu0 %v185
    %219 = vmatprep.subr.mxu0 0.0
    %220 = vmatpush1.msra.mxu0 %v184
    %221 = vmatprep.subr.mxu0 0.0
    %222 = vmatpush1.msra.mxu0 %v183
    %223 = vmatprep.subr.mxu0 0.0
    %224 = vmatpush1.msra.mxu0 %v182
    %225 = vmatprep.subr.mxu0 0.0
    %226 = vmatpush1.msra.mxu0 %v181
    %227 = vmatprep.subr.mxu0 0.0
    %228 = vmatpush1.msra.mxu0 %v180
    %229 = vmatprep.subr.mxu0 0.0
    %230 = vmatpush1.msra.mxu0 %v179
    %231 = vmatprep.subr.mxu0 0.0
    %232 = vmatpush1.msra.mxu0 %v178
    %233 = vmatprep.subr.mxu0 0.0
    %234 = vmatpush1.msra.mxu0 %v177
    %235 = vmatprep.subr.mxu0 0.0
    %236 = vmatpush1.msra.mxu0 %v176
    %237 = vmatprep.subr.mxu0 0.0
    %238 = vmatpush1.msra.mxu0 %v175
    %239 = vmatprep.subr.mxu0 0.0
    %240 = vmatpush2.msra.mxu0 %v206
    %241 = vmatprep.subr.mxu0 0.0
    %242 = vmatpush2.msra.mxu0 %v205
    %243 = vmatprep.subr.mxu0 0.0
    %244 = vmatpush2.msra.mxu0 %v204
    %245 = vmatprep.subr.mxu0 0.0
    %246 = vmatpush2.msra.mxu0 %v203
    %247 = vmatprep.subr.mxu0 0.0
    %248 = vmatpush2.msra.mxu0 %v202
    %249 = vmatprep.subr.mxu0 0.0
    %250 = vmatpush2.msra.mxu0 %v201
    %251 = vmatprep.subr.mxu0 0.0
    %252 = vmatpush2.msra.mxu0 %v200
    %253 = vmatprep.subr.mxu0 0.0
    %254 = vmatpush2.msra.mxu0 %v199
    %255 = vmatprep.subr.mxu0 0.0
    %256 = vmatpush2.msra.mxu0 %v198
    %257 = vmatprep.subr.mxu0 0.0
    %258 = vmatpush2.msra.mxu0 %v197
    %259 = vmatprep.subr.mxu0 0.0
    %260 = vmatpush2.msra.mxu0 %v196
    %261 = vmatprep.subr.mxu0 0.0
    %262 = vmatpush2.msra.mxu0 %v195
    %263 = vmatprep.subr.mxu0 0.0
    %264 = vmatpush2.msra.mxu0 %v194
    %265 = vmatprep.subr.mxu0 0.0
    %266 = vmatpush2.msra.mxu0 %v193
    %267 = vmatprep.subr.mxu0 0.0
    %268 = vmatpush2.msra.mxu0 %v192
    %269 = vmatprep.subr.mxu0 0.0
    %270 = vmatpush2.msra.mxu0 %v191
    %271 = vmatprep.mubr.f32.mxu0 %v164
    %272 = vmatmul.mubr.f32.gmra.mxu0 %v163
    %v273 = vpop.f32.mrf.mxu0
    %v274 = vadd.f32 0.0, %v273
    %v275 = vpop.f32.mrf.mxu0
    %276 = vmatprep.mubr.f32.mxu0 %v166
    %277 = vmatmul.mubr.f32.gmra.mxu0 %v165
    %v278 = vpop.f32.mrf.mxu0
    %v279 = vadd.f32 0.0, %v278
    %v280 = vpop.f32.mrf.mxu0
    %281 = vmatprep.mubr.f32.mxu0 %v168
    %282 = vmatmul.mubr.f32.gmra.mxu0 %v167
    %v283 = vpop.f32.mrf.mxu0
    %v284 = vadd.f32 0.0, %v283
    %v285 = vpop.f32.mrf.mxu0
    %286 = vmatprep.mubr.f32.mxu0 %v170
    %287 = vmatmul.mubr.f32.gmra.mxu0 %v169
    %v288 = vpop.f32.mrf.mxu0
    %v289 = vadd.f32 0.0, %v288
    %v290 = vpop.f32.mrf.mxu0
    %291 = vdwg.mxu0
    %v292 = vadd.f32 %v171, %v274
    %v293 = vadd.f32 %v172, %v279
    %v294 = vadd.f32 %v173, %v284
    %v295 = vadd.f32 %v174, %v289
    %296 = vst.msk [vmem:[#allocation2] sm:$0xff] %vm61, %v292
    %297 = vst.msk [vmem:[#allocation2 + $0x8] sm:$0xff] %vm61, %v293
    %298 = vst.msk [vmem:[#allocation2 + $0x10] sm:$0xff] %vm61, %v294
    %299 = vst.msk [vmem:[#allocation2 + $0x18] sm:$0xff] %vm61, %v295
    // Predicated region
    $region26: #{tpu_custom_call.1} parent=1 // pred_check
      %p300 = pneg %p21
    $region27: #{tpu_custom_call.1} parent=1 // pred_check_branch
      %302 = sbr.rel (%p300) target = $region29
    $region28: #{tpu_custom_call.1} parent=1 // pred_region
      %v303 = vld [vmem:[#allocation2] sm:$0xff]
      %v304 = vld [vmem:[#allocation2 + $0x8] sm:$0xff]
      %v305 = vld [vmem:[#allocation2 + $0x10] sm:$0xff]
      %v306 = vld [vmem:[#allocation2 + $0x18] sm:$0xff]
      %307 = vst.msk [vmem:[#allocation3] sm:$0xff] %vm61, %v303
      %308 = vst.msk [vmem:[#allocation3 + $0x8] sm:$0xff] %vm61, %v304
      %309 = vst.msk [vmem:[#allocation3 + $0x10] sm:$0xff] %vm61, %v305
      %310 = vst.msk [vmem:[#allocation3 + $0x18] sm:$0xff] %vm61, %v306
    $region29: #{tpu_custom_call.1} parent=1 // pred_fallthru
      _
    // Predicated region
    $region30: #{tpu_custom_call.1} parent=1 // pred_check
      _
    $region31: #{tpu_custom_call.1} parent=1 // pred_check_branch
      %312 = sbr.rel (0) target = $region33
    $region32: #{tpu_custom_call.1} parent=1 // pred_region
      %s314 = ssub.s32 512, 512
      %315 = vsyncadd [#allocation4], %s314
      %s316 = sshll.u32 [#allocation3], 4
      %s317 = int_to_ptr.vmem [resolvable:$true] %s316
      %322 = dma.vmem_to_hbm [thread:$0]  %s317, 512, %s5, [#allocation4], 128, 128, 8
    $region33: #{tpu_custom_call.1} parent=1 // pred_fallthru
      _
    // Predicated region
    $region34: #{tpu_custom_call.1} parent=1 // pred_check
      _
    $region35: #{tpu_custom_call.1} parent=1 // pred_check_branch
      %324 = sbr.rel (0) target = $region37
    $region36: #{tpu_custom_call.1} parent=1 // pred_region
      %325 = dma.done [#allocation4], 512
    $region37: #{tpu_custom_call.1} parent=1 // pred_fallthru
      _
    %326 = vsyncpa [#allocation4], 1

</llo_original>
